<compile_context>
chip_gen: v5e
topology: v5e:2x2
jax: 0.10.0
libtpu: 0.0.40
codegen_flags: <defaults>
</compile_context>

<pallas_src>
import functools

import jax
import jax.numpy as jnp
from jax.experimental import pallas as pl
from jax.experimental.pallas import tpu as pltpu


def _round_up(x, m):
    return (x + m - 1) // m * m


def _cyclenet_kernel(idx_ref, x_ref, c1_ref, cp_ref, w1_ref, w2_ref, o_ref, *,
                     seq_len, matmul_dtype):
    # idx_ref: SMEM [B] cycle phases (consumed by the index_maps; unused here).
    del idx_ref
    L = seq_len
    x = x_ref[...].astype(jnp.float32)                       # [L, N]

    # RevIN statistics along the sequence axis (torch.var is unbiased: /(L-1)).
    mean = jnp.mean(x, axis=0, keepdims=True)                # [1, N]
    xm = x - mean
    var = jnp.sum(xm * xm, axis=0, keepdims=True) * (1.0 / (L - 1)) + 1e-5
    xn = xm * jax.lax.rsqrt(var)                             # [L, N]  (EUP rsqrt)

    dn = (((0,), (0,)), ((), ()))                            # contract over L (xT @ W)

    # MLP.  Cyclic subtraction pre-folded: (xn - cq)@W1 + b1 == xn@W1 + c1_tbl.
    h = jax.lax.dot_general(xn.astype(matmul_dtype), w1_ref[...],
                            dimension_numbers=dn,
                            preferred_element_type=jnp.float32)      # [N, D_pad]
    h = jnp.maximum(h + c1_ref[...].astype(jnp.float32), 0.0)
    y = jnp.dot(h.astype(matmul_dtype), w2_ref[...],
                preferred_element_type=jnp.float32)                  # [N, P_pad]
    y = y + cp_ref[...].astype(jnp.float32)

    # Column-oriented ([N, 1]) per-channel stats for the inverse RevIN,
    # produced with two tiny MXU dots (no lane->sublane relayout needed).
    ones_col = jnp.ones((L, 1), dtype=jnp.float32)
    mean_c = jax.lax.dot_general(x, ones_col, dimension_numbers=dn,
                                 preferred_element_type=jnp.float32) * (1.0 / L)
    var_c = jax.lax.dot_general(xm * xm, ones_col, dimension_numbers=dn,
                                preferred_element_type=jnp.float32) * (1.0 / (L - 1))
    std_c = jnp.sqrt(var_c + 1e-5)                           # [N, 1]

    o_ref[...] = (y * std_c + mean_c).astype(o_ref.dtype)    # lane-dense store


def cyclenet_forward(history_data, cycle_data, w1, b1, w2, b2, *,
                     seq_len, pred_len, cycle_len, matmul_dtype=jnp.bfloat16):
    """history_data: [B, L, N, C]  ->  prediction [B, pred_len, N, 1]."""
    B, L, N, _ = history_data.shape
    assert L == seq_len
    D = w1.shape[1]
    P = pred_len
    f32 = jnp.float32
    D_pad = _round_up(D, 128)
    P_pad = _round_up(P, 128)

    # ---------------- plain-JAX glue (tiny, param-only tables) ----------------
    x = history_data[..., 0].astype(f32)                     # [B, L, N] natural layout

    # cycle phase ('daily' pattern), one int per batch element
    idx = (jnp.round(history_data[:, -1, 0, 1] * cycle_len).astype(jnp.int32)
           % cycle_len)                                       # [B]

    # zero-padded parameters (lane-dense hidden / output)
    w1_p = jnp.pad(w1.astype(f32), ((0, 0), (0, D_pad - D)))              # [L, D_pad]
    w2_p = jnp.pad(w2.astype(f32), ((0, D_pad - D), (0, P_pad - P)))      # [D_pad, P_pad]
    b1_p = jnp.pad(b1.astype(f32), (0, D_pad - D))                        # [D_pad]
    b2_p = jnp.pad(b2.astype(f32), (0, P_pad - P))                        # [P_pad]

    # per-phase cyclic tables (depend only on params; cacheable across calls)
    j = jnp.arange(cycle_len, dtype=jnp.int32)
    t = jnp.arange(seq_len, dtype=jnp.int32)
    p = jnp.arange(pred_len, dtype=jnp.int32)
    win = cycle_data[(j[:, None] + t[None, :]) % cycle_len].astype(f32)   # [C, L, N]
    c1_tbl = b1_p[None, None, :] - jnp.einsum('cln,ld->cnd', win, w1_p)   # [C, N, D_pad]
    cpred = cycle_data[(j[:, None] + seq_len + p[None, :]) % cycle_len]   # [C, P, N]
    cp_tbl = b2_p[None, None, :] + jnp.pad(
        jnp.transpose(cpred, (0, 2, 1)).astype(f32),
        ((0, 0), (0, 0), (0, P_pad - P)))                                 # [C, N, P_pad]

    # halve the streamed bytes of the correction tables / weights (bf16 default)
    c1_tbl = c1_tbl.astype(matmul_dtype)
    cp_tbl = cp_tbl.astype(matmul_dtype)
    w1_k = w1_p.astype(matmul_dtype)
    w2_k = w2_p.astype(matmul_dtype)

    # ---------------- Pallas kernel: hot path ----------------
    kernel = functools.partial(_cyclenet_kernel, seq_len=seq_len,
                               matmul_dtype=matmul_dtype)
    out = pl.pallas_call(
        kernel,
        out_shape=jax.ShapeDtypeStruct((B, N, P_pad), f32),
        grid_spec=pltpu.PrefetchScalarGridSpec(
            num_scalar_prefetch=1,                            # idx[B] -> SMEM
            grid=(B,),
            in_specs=[
                # x in its natural [B, L, N] layout (no transpose / pad copies)
                pl.BlockSpec((None, L, N), lambda b, idx_ref: (b, 0, 0)),
                # cyclic-correction tables gathered per batch via scalar prefetch
                pl.BlockSpec((None, N, D_pad), lambda b, idx_ref: (idx_ref[b], 0, 0)),
                pl.BlockSpec((None, N, P_pad), lambda b, idx_ref: (idx_ref[b], 0, 0)),
                # weights: constant index_map -> DMA'd once, resident
                pl.BlockSpec((L, D_pad), lambda b, idx_ref: (0, 0)),
                pl.BlockSpec((D_pad, P_pad), lambda b, idx_ref: (0, 0)),
            ],
            out_specs=pl.BlockSpec((None, N, P_pad), lambda b, idx_ref: (b, 0, 0)),
        ),
        compiler_params=pltpu.CompilerParams(
            # B >= 2 splits across v7x's 2 TensorCores. TODO(synk): add a
            # channel-tile grid axis if B == 1 matters.
            dimension_semantics=("parallel",),
            vmem_limit_bytes=64 * 1024 * 1024),
    )(idx, x, c1_tbl, cp_tbl, w1_k, w2_k)                     # [B, N, P_pad]

    # strip lane padding, back to [B, pred_len, N, 1] (matches y.unsqueeze(-1))
    y = out[:, :, :P]
    return jnp.transpose(y, (0, 2, 1))[..., None]


# ---------------- pure-JAX reference (sanity check) ----------------
def cyclenet_reference(history_data, cycle_data, w1, b1, w2, b2,
                       *, seq_len, pred_len, cycle_len):
    x = history_data[..., 0]                                  # [B, L, N]
    idx = jnp.round(history_data[..., 1][:, -1, 0] * cycle_len).astype(jnp.int32)

    seq_mean = jnp.mean(x, axis=1, keepdims=True)
    seq_var = jnp.var(x, axis=1, keepdims=True, ddof=1) + 1e-5  # unbiased
    xn = (x - seq_mean) / jnp.sqrt(seq_var)

    gi_seq = (idx[:, None] + jnp.arange(seq_len)[None, :]) % cycle_len
    xn = xn - cycle_data[gi_seq]

    xp = jnp.transpose(xn, (0, 2, 1))                         # [B, N, L]
    h = jnp.maximum(xp @ w1 + b1, 0.0)
    y = h @ w2 + b2                                           # [B, N, P]
    y = jnp.transpose(y, (0, 2, 1))                           # [B, P, N]

    gi_pred = (((idx + seq_len) % cycle_len)[:, None]
               + jnp.arange(pred_len)[None, :]) % cycle_len
    y = y + cycle_data[gi_pred]
    y = y * jnp.sqrt(seq_var) + seq_mean
    return y[..., None]


if __name__ == "__main__":
    # small config consistent with the module
    B, seq_len, pred_len, enc_in = 2, 16, 8, 4
    cycle_len, d_model = 24, 32

    key = jax.random.PRNGKey(0)
    k_x, k_cidx, k_cyc, k_w1, k_b1, k_w2, k_b2 = jax.random.split(key, 7)

    # history_data: [B, L, N, C]; feature 0 = values, feature 1 = tod / cycle_len
    values = jax.random.normal(k_x, (B, seq_len, enc_in), dtype=jnp.float32)
    start = jax.random.randint(k_cidx, (B,), 0, cycle_len)
    tod = ((start[:, None] + jnp.arange(seq_len)[None, :]) % cycle_len
           ).astype(jnp.float32) / cycle_len
    tod = jnp.broadcast_to(tod[:, :, None], (B, seq_len, enc_in))
    history_data = jnp.stack([values, tod], axis=-1)          # [B, L, N, 2]

    # parameters (RecurrentCycle data nonzero to exercise the cyclic path)
    cycle_data = 0.1 * jax.random.normal(k_cyc, (cycle_len, enc_in), dtype=jnp.float32)
    w1 = jax.random.normal(k_w1, (seq_len, d_model), dtype=jnp.float32) / jnp.sqrt(seq_len)
    b1 = 0.01 * jax.random.normal(k_b1, (d_model,), dtype=jnp.float32)
    w2 = jax.random.normal(k_w2, (d_model, pred_len), dtype=jnp.float32) / jnp.sqrt(d_model)
    b2 = 0.01 * jax.random.normal(k_b2, (pred_len,), dtype=jnp.float32)

    kwargs = dict(seq_len=seq_len, pred_len=pred_len, cycle_len=cycle_len)

    out_f32 = cyclenet_forward(history_data, cycle_data, w1, b1, w2, b2,
                               matmul_dtype=jnp.float32, **kwargs)
    out_bf16 = cyclenet_forward(history_data, cycle_data, w1, b1, w2, b2,
                                matmul_dtype=jnp.bfloat16, **kwargs)
    out_f32, out_bf16 = jax.block_until_ready((out_f32, out_bf16))

    assert out_f32.shape == (B, pred_len, enc_in, 1)
    assert out_bf16.shape == (B, pred_len, enc_in, 1)

    ref = cyclenet_reference(history_data, cycle_data, w1, b1, w2, b2, **kwargs)
    assert jnp.allclose(out_f32, ref, atol=2e-2, rtol=2e-2)
    assert jnp.allclose(out_bf16, ref, atol=2e-1, rtol=2e-1)

    print("KERNEL_OK")
</pallas_src>

<mosaic_0001>
module attributes {stable_mosaic.version = 11 : i64} {
  func.func @_cyclenet_kernel(%arg0: i32, %arg1: memref<2xi32, #tpu.memory_space<smem>>, %arg2: memref<1x16x4xf32, #tpu.memory_space<vmem>>, %arg3: memref<1x4x128xf32, #tpu.memory_space<vmem>>, %arg4: memref<1x4x128xf32, #tpu.memory_space<vmem>>, %arg5: memref<16x128xf32, #tpu.memory_space<vmem>>, %arg6: memref<128x128xf32, #tpu.memory_space<vmem>>, %arg7: memref<1x4x128xf32, #tpu.memory_space<vmem>>) attributes {dimension_semantics = [#tpu.dimension_semantics<parallel>], iteration_bounds = array<i64: 2>, scalar_prefetch = 1 : i64, scratch_operands = 0 : i64, tpu.core_type = #tpu.core_type<tc>, window_params = [{transform_indices = @transform_0, window_bounds = array<i64: 1, 16, 4>}, {transform_indices = @transform_1, window_bounds = array<i64: 1, 4, 128>}, {transform_indices = @transform_2, window_bounds = array<i64: 1, 4, 128>}, {pipeline_mode = #tpu.pipeline_mode<synchronous>, transform_indices = @transform_3, window_bounds = array<i64: 16, 128>}, {pipeline_mode = #tpu.pipeline_mode<synchronous>, transform_indices = @transform_4, window_bounds = array<i64: 128, 128>}, {transform_indices = @transform_5, window_bounds = array<i64: 1, 4, 128>}]} {
    %c0 = arith.constant 0 : index
    %c0_0 = arith.constant 0 : index
    %c0_1 = arith.constant 0 : index
    %0 = vector.load %arg2[%c0, %c0_0, %c0_1] : memref<1x16x4xf32, #tpu.memory_space<vmem>>, vector<1x16x4xf32>
    %1 = vector.shape_cast %0 : vector<1x16x4xf32> to vector<16x4xf32>
    %cst = arith.constant dense<0.000000e+00> : vector<4xf32>
    %2 = vector.multi_reduction <add>, %1, %cst [0] : vector<16x4xf32> to vector<4xf32>
    %3 = vector.shape_cast %2 : vector<4xf32> to vector<1x4xf32>
    %cst_2 = arith.constant 1.600000e+01 : f32
    %4 = vector.broadcast %cst_2 : f32 to vector<1x4xf32>
    %5 = arith.divf %3, %4 : vector<1x4xf32>
    %6 = vector.broadcast %5 : vector<1x4xf32> to vector<16x4xf32>
    %7 = arith.subf %1, %6 : vector<16x4xf32>
    %8 = arith.mulf %7, %7 : vector<16x4xf32>
    %cst_3 = arith.constant dense<0.000000e+00> : vector<4xf32>
    %9 = vector.multi_reduction <add>, %8, %cst_3 [0] : vector<16x4xf32> to vector<4xf32>
    %10 = vector.shape_cast %9 : vector<4xf32> to vector<1x4xf32>
    %cst_4 = arith.constant 0.0666666701 : f32
    %11 = vector.broadcast %cst_4 : f32 to vector<1x4xf32>
    %12 = arith.mulf %10, %11 : vector<1x4xf32>
    %cst_5 = arith.constant 9.99999974E-6 : f32
    %13 = vector.broadcast %cst_5 : f32 to vector<1x4xf32>
    %14 = arith.addf %12, %13 : vector<1x4xf32>
    %15 = math.rsqrt %14 : vector<1x4xf32>
    %16 = vector.broadcast %15 : vector<1x4xf32> to vector<16x4xf32>
    %17 = arith.mulf %7, %16 : vector<16x4xf32>
    %c0_6 = arith.constant 0 : index
    %c0_7 = arith.constant 0 : index
    %18 = vector.load %arg5[%c0_6, %c0_7] : memref<16x128xf32, #tpu.memory_space<vmem>>, vector<16x128xf32>
    %cst_8 = arith.constant dense<0.000000e+00> : vector<4x128xf32>
    %19 = tpu.matmul %17, %18, %cst_8 {dimension_numbers = #tpu.dot_dimension_numbers<[0], [0], [1], [1], [0, 1, 1, 1], [], []>} : vector<16x4xf32>, vector<16x128xf32>, vector<4x128xf32> -> vector<4x128xf32>
    %c0_9 = arith.constant 0 : index
    %c0_10 = arith.constant 0 : index
    %c0_11 = arith.constant 0 : index
    %20 = vector.load %arg3[%c0_9, %c0_10, %c0_11] : memref<1x4x128xf32, #tpu.memory_space<vmem>>, vector<1x4x128xf32>
    %21 = vector.shape_cast %20 : vector<1x4x128xf32> to vector<4x128xf32>
    %22 = arith.addf %19, %21 : vector<4x128xf32>
    %cst_12 = arith.constant 0.000000e+00 : f32
    %23 = vector.broadcast %cst_12 : f32 to vector<4x128xf32>
    %24 = arith.maximumf %22, %23 : vector<4x128xf32>
    %c0_13 = arith.constant 0 : index
    %c0_14 = arith.constant 0 : index
    %25 = vector.load %arg6[%c0_13, %c0_14] : memref<128x128xf32, #tpu.memory_space<vmem>>, vector<128x128xf32>
    %cst_15 = arith.constant dense<0.000000e+00> : vector<4x128xf32>
    %26 = tpu.matmul %24, %25, %cst_15 {dimension_numbers = #tpu.dot_dimension_numbers<[1], [0], [0], [1], [0, 0, 1, 1], [], []>} : vector<4x128xf32>, vector<128x128xf32>, vector<4x128xf32> -> vector<4x128xf32>
    %c0_16 = arith.constant 0 : index
    %c0_17 = arith.constant 0 : index
    %c0_18 = arith.constant 0 : index
    %27 = vector.load %arg4[%c0_16, %c0_17, %c0_18] : memref<1x4x128xf32, #tpu.memory_space<vmem>>, vector<1x4x128xf32>
    %28 = vector.shape_cast %27 : vector<1x4x128xf32> to vector<4x128xf32>
    %29 = arith.addf %26, %28 : vector<4x128xf32>
    %cst_19 = arith.constant 1.000000e+00 : f32
    %30 = vector.broadcast %cst_19 : f32 to vector<16x1xf32>
    %cst_20 = arith.constant dense<0.000000e+00> : vector<4x1xf32>
    %31 = tpu.matmul %1, %30, %cst_20 {dimension_numbers = #tpu.dot_dimension_numbers<[0], [0], [1], [1], [0, 1, 1, 1], [], []>} : vector<16x4xf32>, vector<16x1xf32>, vector<4x1xf32> -> vector<4x1xf32>
    %cst_21 = arith.constant 6.250000e-02 : f32
    %32 = vector.broadcast %cst_21 : f32 to vector<4x1xf32>
    %33 = arith.mulf %31, %32 : vector<4x1xf32>
    %34 = arith.mulf %7, %7 : vector<16x4xf32>
    %cst_22 = arith.constant dense<0.000000e+00> : vector<4x1xf32>
    %35 = tpu.matmul %34, %30, %cst_22 {dimension_numbers = #tpu.dot_dimension_numbers<[0], [0], [1], [1], [0, 1, 1, 1], [], []>} : vector<16x4xf32>, vector<16x1xf32>, vector<4x1xf32> -> vector<4x1xf32>
    %cst_23 = arith.constant 0.0666666701 : f32
    %36 = vector.broadcast %cst_23 : f32 to vector<4x1xf32>
    %37 = arith.mulf %35, %36 : vector<4x1xf32>
    %cst_24 = arith.constant 9.99999974E-6 : f32
    %38 = vector.broadcast %cst_24 : f32 to vector<4x1xf32>
    %39 = arith.addf %37, %38 : vector<4x1xf32>
    %40 = math.sqrt %39 : vector<4x1xf32>
    %41 = vector.broadcast %40 : vector<4x1xf32> to vector<4x128xf32>
    %42 = arith.mulf %29, %41 : vector<4x128xf32>
    %43 = vector.broadcast %33 : vector<4x1xf32> to vector<4x128xf32>
    %44 = arith.addf %42, %43 : vector<4x128xf32>
    %c0_25 = arith.constant 0 : index
    %c0_26 = arith.constant 0 : index
    %c0_27 = arith.constant 0 : index
    %45 = vector.load %arg7[%c0_25, %c0_26, %c0_27] : memref<1x4x128xf32, #tpu.memory_space<vmem>>, vector<1x4x128xf32>
    %46 = vector.shape_cast %45 : vector<1x4x128xf32> to vector<4x128xf32>
    %47 = vector.shape_cast %44 : vector<4x128xf32> to vector<1x4x128xf32>
    tpu.vector_store %arg7[%c0_25, %c0_26, %c0_27], %47 {strides = array<i32>} : memref<1x4x128xf32, #tpu.memory_space<vmem>>, vector<1x4x128xf32>,
    return
  }
  func.func @transform_0(%arg0: i32, %arg1: memref<2xi32, #tpu.memory_space<smem>>) -> (i32, i32, i32) {
    %c0_i32 = arith.constant 0 : i32
    %c0_i32_0 = arith.constant 0 : i32
    %c0_i32_1 = arith.constant 0 : i32
    return %arg0, %c0_i32, %c0_i32_0 : i32, i32, i32
  }
  func.func @transform_1(%arg0: i32, %arg1: memref<2xi32, #tpu.memory_space<smem>>) -> (i32, i32, i32) {
    %0 = arith.index_cast %arg0 : i32 to index
    %1 = memref.load %arg1[%0] : memref<2xi32, #tpu.memory_space<smem>>
    %c0_i32 = arith.constant 0 : i32
    %c0_i32_0 = arith.constant 0 : i32
    %c0_i32_1 = arith.constant 0 : i32
    return %1, %c0_i32, %c0_i32_0 : i32, i32, i32
  }
  func.func @transform_2(%arg0: i32, %arg1: memref<2xi32, #tpu.memory_space<smem>>) -> (i32, i32, i32) {
    %0 = arith.index_cast %arg0 : i32 to index
    %1 = memref.load %arg1[%0] : memref<2xi32, #tpu.memory_space<smem>>
    %c0_i32 = arith.constant 0 : i32
    %c0_i32_0 = arith.constant 0 : i32
    %c0_i32_1 = arith.constant 0 : i32
    return %1, %c0_i32, %c0_i32_0 : i32, i32, i32
  }
  func.func @transform_3(%arg0: i32, %arg1: memref<2xi32, #tpu.memory_space<smem>>) -> (i32, i32) {
    %c0_i32 = arith.constant 0 : i32
    %c0_i32_0 = arith.constant 0 : i32
    %c0_i32_1 = arith.constant 0 : i32
    return %c0_i32, %c0_i32_0 : i32, i32
  }
  func.func @transform_4(%arg0: i32, %arg1: memref<2xi32, #tpu.memory_space<smem>>) -> (i32, i32) {
    %c0_i32 = arith.constant 0 : i32
    %c0_i32_0 = arith.constant 0 : i32
    %c0_i32_1 = arith.constant 0 : i32
    return %c0_i32, %c0_i32_0 : i32, i32
  }
  func.func @transform_5(%arg0: i32, %arg1: memref<2xi32, #tpu.memory_space<smem>>) -> (i32, i32, i32) {
    %c0_i32 = arith.constant 0 : i32
    %c0_i32_0 = arith.constant 0 : i32
    %c0_i32_1 = arith.constant 0 : i32
    return %arg0, %c0_i32, %c0_i32_0 : i32, i32, i32
  }
}

</mosaic_0001>

<llo_original>
// kernel: tpu_custom_call.1
$region0: #{tpu_custom_call.1}
  #allocation0 [shape = 'u32[]', space=smem, size = 0x4, offset = 0x4, fixed_abs, tag = 'smem constant byte address 0x4 - core index']
  #allocation1 [shape = 'u32[72,128]{1,0:T(1,128)}', space=vmem, size = 0x9000, scoped, tag = 'internal scratch']
  #allocation2 [shape = 's32[1]{0}', space=sflag, size = 0x4, scoped, tag = 'scoped memory for tpu_custom_call.1']
  #allocation3 [shape = 'u8[512]{0}', space=smem, size = 0x200, scoped, tag = 'prefetched SMEM operand 0']
  %s0 = inlined_call_operand.vmem [shape: s32[2], index: 0, kind: input, shape index: {}]
  %s1 = inlined_call_operand.vmem [shape: f32[2,16,4], index: 1, kind: input, shape index: {}]
  %s2 = inlined_call_operand.hbm [shape: f32[24,4,128], index: 2, kind: input, shape index: {}]
  %s3 = inlined_call_operand.hbm [shape: f32[24,4,128], index: 3, kind: input, shape index: {}]
  %s4 = inlined_call_operand.vmem [shape: f32[16,128], index: 4, kind: input, shape index: {}]
  %s5 = inlined_call_operand.hbm [shape: f32[128,128], index: 5, kind: input, shape index: {}]
  %s6 = inlined_call_operand.hbm [shape: f32[2,4,128], index: 6, kind: output, shape index: {}]
  %s7 = sld [smem:[#allocation0]]
  $region65: #{tpu_custom_call.1} parent=0
    _
  %s9 = ssub.s32 1, %s7
  %s10 = scalar_select 0, %s9, %s7
  %s12 = sshll.u32 %s0, 4
  %s13 = int_to_ptr.vmem [resolvable:$true] %s12
  %15 = dma.vmem_to_smem %s13, 16, [#allocation3], [#allocation2]
  %17 = dma.done [#allocation2], 16
  %18 = sfence
  $region1: #{tpu_custom_call.1} parent=0
    #allocation4 [shape = 'u8[4096]{0}', space=vmem, size = 0x1000, scoped, tag = 'input window, operand 2']
    #allocation5 [shape = 's32[2]{0}', space=sflag, size = 0x8, scoped, tag = 'scoped memory for tpu_custom_call.1']
    #allocation6 [shape = 's32[2]{0}', space=sflag, size = 0x8, scoped, tag = 'scoped memory for tpu_custom_call.1']
    #allocation7 [shape = 'u8[4096]{0}', space=vmem, size = 0x1000, scoped, tag = 'input window, operand 3']
    #allocation8 [shape = 's32[2]{0}', space=sflag, size = 0x8, scoped, tag = 'scoped memory for tpu_custom_call.1']
    #allocation9 [shape = 'u8[65536]{0}', space=vmem, size = 0x10000, scoped, tag = 'input window, operand 5, single buffered']
    #allocation10 [shape = 'u8[4096]{0}', space=vmem, size = 0x1000, scoped, tag = 'output window, operand 0']
    %19 = vsyncpa [#allocation5], 0
    %s20 = scalar_lea.sflag [#allocation5], 1
    %21 = vsyncpa %s20, 0
    %22 = vsyncpa [#allocation8], 0
    %s23 = scalar_lea.sflag [#allocation8], 1
    %24 = vsyncpa %s23, 0
    %25 = vsyncpa [#allocation6], 0
    %s26 = scalar_lea.sflag [#allocation6], 1
    %27 = vsyncpa %s26, 0
    loop: start=0, step=1, limit=4
    $region2: #{tpu_custom_call.1} parent=1 // loop_pre_header
      _
    $region3: #{tpu_custom_call.1} parent=1 // loop_header
      %s29 = sphi 0, %s33
      %p30 = scmp.ge.s32.totalorder %s29, 4
      %s39 = sphi 0, %s41
      %s42 = sphi 0, %s39
      %s43 = sphi 0, %s42
      %s59 = sphi 0, %s43
      %s67 = sphi 0, %s69
      %s70 = sphi 0, %s67
      %s71 = sphi 0, %s70
      %s87 = sphi 0, %s71
      %s95 = sphi 0, %s97
      %s98 = sphi 0, %s95
      %s99 = sphi 0, %s98
      %s115 = sphi 0, %s99
      %s119 = sphi 0, %s119
      %s121 = sphi 0, %s119
      %s122 = sphi 0, %s121
      %s136 = sphi 0, %s122
      %s140 = sphi 0, %s140
      %s142 = sphi 0, %s140
      %s143 = sphi 0, %s142
      %s157 = sphi 0, %s143
      %s163 = sphi 0, %s165
      %s166 = sphi 0, %s163
      %s167 = sphi 0, %s166
      %s183 = sphi 0, %s167
    $region4: #{tpu_custom_call.1} parent=1 // loop_header_branch
      %32 = sbr.rel (%p30) target = $region8
    $region5: #{tpu_custom_call.1} parent=1 // loop_body
      %s34 = ssub.s32 %s29, 1
      %s35 = ssub.s32 %s29, 2
      %s36 = sadd.s32 %s29, 1
      %s37 = ssub.s32 %s29, %s36
      %p38 = scmp.eq.s32.totalorder %s37, 0
      %s40 = sadd.s32 %s39, 1
      %s41 = scalar_select %p38, %s39, %s40
      %p44 = pneg %p38
      %p45 = scmp.eq.s32.totalorder %s29, 1
      %p46 = por %p44, %p45
      %p47 = scmp.ne.s32.totalorder %s39, %s42
      %p48 = scmp.eq.s32.totalorder %s29, 0
      %p49 = por %p47, %p48
      %p50 = scmp.ne.s32.totalorder %s39, %s42
      %p51 = scmp.eq.s32.totalorder %s34, 1
      %p52 = por %p50, %p51
      %p53 = scmp.ne.s32.totalorder %s42, %s43
      %p54 = scmp.eq.s32.totalorder %s34, 0
      %p55 = por %p53, %p54
      %p56 = scmp.ne.s32.totalorder %s42, %s43
      %p57 = scmp.eq.s32.totalorder %s35, 1
      %p58 = por %p56, %p57
      %p60 = scmp.ne.s32.totalorder %s43, %s59
      %p61 = scmp.eq.s32.totalorder %s35, 0
      %p62 = por %p60, %p61
      %s63 = sld [smem:[#allocation3 + %s29]]
      %s64 = sld [smem:[#allocation3 + %s36]]
      %s65 = ssub.s32 %s63, %s64
      %p66 = scmp.eq.s32.totalorder %s65, 0
      %s68 = sadd.s32 %s67, 1
      %s69 = scalar_select %p66, %s67, %s68
      %p72 = pneg %p66
      %p73 = scmp.eq.s32.totalorder %s29, 1
      %p74 = por %p72, %p73
      %p75 = scmp.ne.s32.totalorder %s67, %s70
      %p76 = scmp.eq.s32.totalorder %s29, 0
      %p77 = por %p75, %p76
      %p78 = scmp.ne.s32.totalorder %s67, %s70
      %p79 = scmp.eq.s32.totalorder %s34, 1
      %p80 = por %p78, %p79
      %p81 = scmp.ne.s32.totalorder %s70, %s71
      %p82 = scmp.eq.s32.totalorder %s34, 0
      %p83 = por %p81, %p82
      %p84 = scmp.ne.s32.totalorder %s70, %s71
      %p85 = scmp.eq.s32.totalorder %s35, 1
      %p86 = por %p84, %p85
      %p88 = scmp.ne.s32.totalorder %s71, %s87
      %p89 = scmp.eq.s32.totalorder %s35, 0
      %p90 = por %p88, %p89
      %s91 = sld [smem:[#allocation3 + %s29]]
      %s92 = sld [smem:[#allocation3 + %s36]]
      %s93 = ssub.s32 %s91, %s92
      %p94 = scmp.eq.s32.totalorder %s93, 0
      %s96 = sadd.s32 %s95, 1
      %s97 = scalar_select %p94, %s95, %s96
      %p100 = pneg %p94
      %p101 = scmp.eq.s32.totalorder %s29, 1
      %p102 = por %p100, %p101
      %p103 = scmp.ne.s32.totalorder %s95, %s98
      %p104 = scmp.eq.s32.totalorder %s29, 0
      %p105 = por %p103, %p104
      %p106 = scmp.ne.s32.totalorder %s95, %s98
      %p107 = scmp.eq.s32.totalorder %s34, 1
      %p108 = por %p106, %p107
      %p109 = scmp.ne.s32.totalorder %s98, %s99
      %p110 = scmp.eq.s32.totalorder %s34, 0
      %p111 = por %p109, %p110
      %p112 = scmp.ne.s32.totalorder %s98, %s99
      %p113 = scmp.eq.s32.totalorder %s35, 1
      %p114 = por %p112, %p113
      %p116 = scmp.ne.s32.totalorder %s99, %s115
      %p117 = scmp.eq.s32.totalorder %s35, 0
      %p118 = por %p116, %p117
      %s120 = sadd.s32 %s119, 1
      %p123 = scmp.eq.s32.totalorder %s29, 1
      %p124 = scmp.ne.s32.totalorder %s119, %s121
      %p125 = scmp.eq.s32.totalorder %s29, 0
      %p126 = por %p124, %p125
      %p127 = scmp.ne.s32.totalorder %s119, %s121
      %p128 = scmp.eq.s32.totalorder %s34, 1
      %p129 = por %p127, %p128
      %p130 = scmp.ne.s32.totalorder %s121, %s122
      %p131 = scmp.eq.s32.totalorder %s34, 0
      %p132 = por %p130, %p131
      %p133 = scmp.ne.s32.totalorder %s121, %s122
      %p134 = scmp.eq.s32.totalorder %s35, 1
      %p135 = por %p133, %p134
      %p137 = scmp.ne.s32.totalorder %s122, %s136
      %p138 = scmp.eq.s32.totalorder %s35, 0
      %p139 = por %p137, %p138
      %s141 = sadd.s32 %s140, 1
      %p144 = scmp.eq.s32.totalorder %s29, 1
      %p145 = scmp.ne.s32.totalorder %s140, %s142
      %p146 = scmp.eq.s32.totalorder %s29, 0
      %p147 = por %p145, %p146
      %p148 = scmp.ne.s32.totalorder %s140, %s142
      %p149 = scmp.eq.s32.totalorder %s34, 1
      %p150 = por %p148, %p149
      %p151 = scmp.ne.s32.totalorder %s142, %s143
      %p152 = scmp.eq.s32.totalorder %s34, 0
      %p153 = por %p151, %p152
      %p154 = scmp.ne.s32.totalorder %s142, %s143
      %p155 = scmp.eq.s32.totalorder %s35, 1
      %p156 = por %p154, %p155
      %p158 = scmp.ne.s32.totalorder %s143, %s157
      %p159 = scmp.eq.s32.totalorder %s35, 0
      %p160 = por %p158, %p159
      %s161 = ssub.s32 %s29, %s36
      %p162 = scmp.eq.s32.totalorder %s161, 0
      %s164 = sadd.s32 %s163, 1
      %s165 = scalar_select %p162, %s163, %s164
      %p168 = pneg %p162
      %p169 = scmp.eq.s32.totalorder %s29, 1
      %p170 = por %p168, %p169
      %p171 = scmp.ne.s32.totalorder %s163, %s166
      %p172 = scmp.eq.s32.totalorder %s29, 0
      %p173 = por %p171, %p172
      %p174 = scmp.ne.s32.totalorder %s163, %s166
      %p175 = scmp.eq.s32.totalorder %s34, 1
      %p176 = por %p174, %p175
      %p177 = scmp.ne.s32.totalorder %s166, %s167
      %p178 = scmp.eq.s32.totalorder %s34, 0
      %p179 = por %p177, %p178
      %p180 = scmp.ne.s32.totalorder %s166, %s167
      %p181 = scmp.eq.s32.totalorder %s35, 1
      %p182 = por %p180, %p181
      %p184 = scmp.ne.s32.totalorder %s167, %s183
      %p185 = scmp.eq.s32.totalorder %s35, 0
      %p186 = por %p184, %p185
      %p187 = scmp.le.s32.totalorder 1, %s29
      %p188 = scmp.lt.s32.totalorder %s29, 3
      %p189 = pnand %p187, %p188
      %p190 = pneg %p189
      // Predicated region
      $region9: #{tpu_custom_call.1} parent=5 // pred_check
        _
      $region10: #{tpu_custom_call.1} parent=5 // pred_check_branch
        %192 = sbr.rel (%p189) target = $region12
      $region11: #{tpu_custom_call.1} parent=5 // pred_region
        %s193 = ssub.s32 %s29, 1
        // Predicated region
        $region13: #{tpu_custom_call.1} parent=11 // pred_check
          %p194 = pneg %p132
        $region14: #{tpu_custom_call.1} parent=11 // pred_check_branch
          %196 = sbr.rel (%p194) target = $region16
        $region15: #{tpu_custom_call.1} parent=11 // pred_region
          _
        $region16: #{tpu_custom_call.1} parent=11 // pred_fallthru
          _
        // Predicated region
        $region17: #{tpu_custom_call.1} parent=11 // pred_check
          %p197 = pneg %p153
        $region18: #{tpu_custom_call.1} parent=11 // pred_check_branch
          %199 = sbr.rel (%p197) target = $region20
        $region19: #{tpu_custom_call.1} parent=11 // pred_region
          %201 = vsyncadd [#allocation8], 0
          %s202 = sshll.u32 %s5, 4
          %s203 = int_to_ptr.hbm [resolvable:$true] %s202
          %s204 = sshll.u32 [#allocation9], 4
          %s205 = int_to_ptr.vmem [resolvable:$true] %s204
          %210 = dma.hbm_to_vmem [thread:$0]  %s203, 2048, %s205, [#allocation8], 128, 128, 8
        $region20: #{tpu_custom_call.1} parent=11 // pred_fallthru
          _
      $region12: #{tpu_custom_call.1} parent=5 // pred_fallthru
        _
      %p211 = scmp.lt.s32.totalorder %s29, 2
      // Predicated region
      $region21: #{tpu_custom_call.1} parent=5 // pred_check
        %p212 = pneg %p211
      $region22: #{tpu_custom_call.1} parent=5 // pred_check_branch
        %214 = sbr.rel (%p212) target = $region24
      $region23: #{tpu_custom_call.1} parent=5 // pred_region
        // Predicated region
        $region25: #{tpu_custom_call.1} parent=23 // pred_check
          %p215 = pneg %p49
        $region26: #{tpu_custom_call.1} parent=23 // pred_check_branch
          %217 = sbr.rel (%p215) target = $region28
        $region27: #{tpu_custom_call.1} parent=23 // pred_region
          %p218 = scmp.lt.s32.totalorder %s29, 1
          %s219 = scalar_select %p218, %s29, 1
          %s220 = smul.addr %s219, 2
          %s221 = smul.addr %s220, 8
          %s222 = scalar_lea.vmem %s1, %s221
        $region28: #{tpu_custom_call.1} parent=23 // pred_fallthru
          _
        // Predicated region
        $region29: #{tpu_custom_call.1} parent=23 // pred_check
          %p223 = pneg %p77
        $region30: #{tpu_custom_call.1} parent=23 // pred_check_branch
          %225 = sbr.rel (%p223) target = $region32
        $region31: #{tpu_custom_call.1} parent=23 // pred_region
          %s226 = sand.u32 %s67, 1
          %s227 = scalar_lea.sflag [#allocation5], %s226
          %s228 = sand.u32 %s67, 1
          %s229 = smul.addr %s228, 4
          %s230 = scalar_lea.vmem [#allocation4], %s229
          %s231 = sld [smem:[#allocation3 + %s29]]
          %233 = vsyncadd %s227, 0
          %s234 = smul.addr %s231, 4
          %s235 = scalar_lea.hbm %s2, %s234
          %s237 = sshll.u32 %s235, 4
          %s238 = int_to_ptr.hbm [resolvable:$true] %s237
          %s239 = sshll.u32 %s230, 4
          %s240 = int_to_ptr.vmem [resolvable:$true] %s239
          %242 = dma.hbm_to_vmem [thread:$0]  %s238, 64, %s240, %s227
        $region32: #{tpu_custom_call.1} parent=23 // pred_fallthru
          _
        // Predicated region
        $region33: #{tpu_custom_call.1} parent=23 // pred_check
          %p243 = pneg %p105
        $region34: #{tpu_custom_call.1} parent=23 // pred_check_branch
          %245 = sbr.rel (%p243) target = $region36
        $region35: #{tpu_custom_call.1} parent=23 // pred_region
          %s246 = sand.u32 %s29, 1
          %s247 = scalar_lea.sflag [#allocation8], %s246
          %s248 = sand.u32 %s95, 1
          %s249 = smul.addr %s248, 4
          %s250 = scalar_lea.vmem [#allocation7], %s249
          %s251 = sld [smem:[#allocation3 + %s29]]
          %253 = vsyncadd %s247, 0
          %s254 = smul.addr %s251, 4
          %s255 = scalar_lea.hbm %s3, %s254
          %s257 = sshll.u32 %s255, 4
          %s258 = int_to_ptr.hbm [resolvable:$true] %s257
          %s259 = sshll.u32 %s250, 4
          %s260 = int_to_ptr.vmem [resolvable:$true] %s259
          %262 = dma.hbm_to_vmem [thread:$0]  %s258, 64, %s260, %s247
        $region36: #{tpu_custom_call.1} parent=23 // pred_fallthru
          _
      $region24: #{tpu_custom_call.1} parent=5 // pred_fallthru
        _
      %p263 = scmp.le.s32.totalorder 1, %s29
      %p264 = scmp.lt.s32.totalorder %s29, 3
      %p265 = pnand %p263, %p264
      %p266 = pneg %p265
      // Predicated region
      $region37: #{tpu_custom_call.1} parent=5 // pred_check
        _
      $region38: #{tpu_custom_call.1} parent=5 // pred_check_branch
        %268 = sbr.rel (%p265) target = $region40
      $region39: #{tpu_custom_call.1} parent=5 // pred_region
        %s269 = ssub.s32 %s29, 1
        %s270 = sand.u32 %s70, 1
        %s271 = scalar_lea.sflag [#allocation5], %s270
        %s272 = sand.u32 %s70, 1
        %s273 = smul.addr %s272, 4
        %s274 = scalar_lea.vmem [#allocation4], %s273
        // Predicated region
        $region41: #{tpu_custom_call.1} parent=39 // pred_check
          %p275 = pneg %p83
        $region42: #{tpu_custom_call.1} parent=39 // pred_check_branch
          %277 = sbr.rel (%p275) target = $region44
        $region43: #{tpu_custom_call.1} parent=39 // pred_region
          %279 = dma.done %s271, 64
        $region44: #{tpu_custom_call.1} parent=39 // pred_fallthru
          _
        %s280 = sand.u32 %s34, 1
        %s281 = scalar_lea.sflag [#allocation8], %s280
        %s282 = sand.u32 %s98, 1
        %s283 = smul.addr %s282, 4
        %s284 = scalar_lea.vmem [#allocation7], %s283
        // Predicated region
        $region45: #{tpu_custom_call.1} parent=39 // pred_check
          %p285 = pneg %p111
        $region46: #{tpu_custom_call.1} parent=39 // pred_check_branch
          %287 = sbr.rel (%p285) target = $region48
        $region47: #{tpu_custom_call.1} parent=39 // pred_region
          %289 = dma.done %s281, 64
        $region48: #{tpu_custom_call.1} parent=39 // pred_fallthru
          _
        // Predicated region
        $region49: #{tpu_custom_call.1} parent=39 // pred_check
          %p290 = pneg %p153
        $region50: #{tpu_custom_call.1} parent=39 // pred_check_branch
          %292 = sbr.rel (%p290) target = $region52
        $region51: #{tpu_custom_call.1} parent=39 // pred_region
          %294 = dma.done [#allocation8], 2048
        $region52: #{tpu_custom_call.1} parent=39 // pred_fallthru
          _
        %p295 = scmp.lt.s32.totalorder %s34, 1
        %s296 = scalar_select %p295, %s34, 1
        %s297 = smul.addr %s296, 2
        %s298 = smul.addr %s297, 8
        %s299 = scalar_lea.vmem %s1, %s298
        %p300 = pneg %p55
        %p301 = pneg %p52
        %s302 = sand.u32 %s70, 1
        %s303 = scalar_lea.sflag [#allocation5], %s302
        %s304 = sand.u32 %s70, 1
        %s305 = smul.addr %s304, 4
        %s306 = scalar_lea.vmem [#allocation4], %s305
        %p307 = pneg %p83
        %p308 = pneg %p80
        %s309 = sand.u32 %s34, 1
        %s310 = scalar_lea.sflag [#allocation8], %s309
        %s311 = sand.u32 %s98, 1
        %s312 = smul.addr %s311, 4
        %s313 = scalar_lea.vmem [#allocation7], %s312
        %p314 = pneg %p111
        %p315 = pneg %p108
        %p316 = pneg %p132
        %p317 = pneg %p129
        %p318 = pneg %p153
        %p319 = pneg %p150
        %p320 = pneg %p179
        %p321 = pneg %p176
        %s322 = sand.u32 %s166, 1
        %s323 = scalar_lea.sflag [#allocation6], %s322
        %s324 = sand.u32 %s166, 1
        %s325 = smul.addr %s324, 4
        %s326 = scalar_lea.vmem [#allocation10], %s325
        %p327 = scmp.lt.s32.totalorder %s34, 1
        %s328 = scalar_select %p327, %s34, 1
        %s329 = smul.addr %s328, 2
        %s330 = smul.addr %s329, 8
        %s331 = scalar_lea.vmem %s1, %s330
        %s332 = sld [smem:[#allocation3 + %s34]]
        %s333 = sld [smem:[#allocation3 + %s34]]
        %v334 = vld [vmem:[%s331] sm:$0xff]
        %v335 = vld [vmem:[%s331 + $0x8] sm:$0xff]
        %vm336 = vcmask 31744
        %v337 = vsel %vm336, %v334, 0.0
        %v338 = vsel %vm336, %v335, 0.0
        %v339 = vadd.f32 %v337, %v338
        %v340 = vrot.slane %v339, 4
        %v341 = vadd.f32 %v339, %v340
        %v342 = vrot.slane %v341, 2
        %v343 = vadd.f32 %v341, %v342
        %v344 = vrot.slane %v343, 1
        %v345 = vadd.f32 %v343, %v344
        %v346 = vrcp.pop 16.0
        %v347 = vmul.f32 16.0, %v346
        %v348 = vsub.f32 1.0, %v347
        %v349 = vmul.f32 %v346, %v348
        %v350 = vadd.f32 %v346, %v349
        %vm351 = vweird.f32 %v346
        %v352 = vsel %vm351, %v346, %v350
        %v353 = vmul.f32 %v345, %v352
        %v354 = vsub.f32 %v334, %v353
        %v355 = vsub.f32 %v335, %v353
        %v356 = vmul.f32 %v354, %v354
        %v357 = vmul.f32 %v355, %v355
        %v358 = vsel %vm336, %v356, 0.0
        %v359 = vsel %vm336, %v357, 0.0
        %v360 = vadd.f32 %v358, %v359
        %v361 = vrot.slane %v360, 4
        %v362 = vadd.f32 %v360, %v361
        %v363 = vrot.slane %v362, 2
        %v364 = vadd.f32 %v362, %v363
        %v365 = vrot.slane %v364, 1
        %v366 = vadd.f32 %v364, %v365
        %v367 = vmul.f32 %v366, 0.06666667
        %v368 = vadd.f32 %v367, 1e-05
        %v369 = vrsqrt.pop %v368
        %v370 = vmul.f32 %v369, %v368
        %v371 = vmul.f32 %v370, %v369
        %v372 = vmul.f32 0.5, %v371
        %v373 = vsub.f32 1.5, %v372
        %v374 = vmul.f32 %v369, %v373
        %vm375 = vweird.f32 %v368
        %vm376 = vweird.f32 %v369
        %vm377 = vmor %vm375, %vm376
        %v378 = vsel %vm377, %v369, %v374
        %v379 = vmul.f32 %v354, %v378
        %v380 = vmul.f32 %v355, %v378
        %v381 = vld [vmem:[%s4] sm:$0xff]
        %v382 = vld [vmem:[%s4 + $0x8] sm:$0xff]
        %v383 = vld [vmem:[%s274] sm:$0xf]
        %384 = vxpose.xlu0.b32.start [1/16] %v379, 128
        %385 = vxpose.xlu0.b32.cont [2/16] %v380, 128
        %386 = vxpose.xlu0.b32.cont [3/16] 0.0, 128
        %387 = vxpose.xlu0.b32.cont [4/16] 0.0, 128
        %388 = vxpose.xlu0.b32.cont [5/16] 0.0, 128
        %389 = vxpose.xlu0.b32.cont [6/16] 0.0, 128
        %390 = vxpose.xlu0.b32.cont [7/16] 0.0, 128
        %391 = vxpose.xlu0.b32.cont [8/16] 0.0, 128
        %392 = vxpose.xlu0.b32.cont [9/16] 0.0, 128
        %393 = vxpose.xlu0.b32.cont [10/16] 0.0, 128
        %394 = vxpose.xlu0.b32.cont [11/16] 0.0, 128
        %395 = vxpose.xlu0.b32.cont [12/16] 0.0, 128
        %396 = vxpose.xlu0.b32.cont [13/16] 0.0, 128
        %397 = vxpose.xlu0.b32.cont [14/16] 0.0, 128
        %398 = vxpose.xlu0.b32.cont [15/16] 0.0, 128
        %399 = vxpose.xlu0.b32.end [16/16] 0.0, 128
        %v400 = vpop.trf.xlu0
        %v401 = vpop.trf.xlu0
        %v402 = vpop.trf.xlu0
        %v403 = vpop.trf.xlu0
        %v404 = vpop.trf.xlu0
        %v405 = vpop.trf.xlu0
        %v406 = vpop.trf.xlu0
        %v407 = vpop.trf.xlu0
        %v408 = vpop.trf.xlu0
        %v409 = vpop.trf.xlu0
        %v410 = vpop.trf.xlu0
        %v411 = vpop.trf.xlu0
        %v412 = vpop.trf.xlu0
        %v413 = vpop.trf.xlu0
        %v414 = vpop.trf.xlu0
        %v415 = vpop.trf.xlu0
        %vm416 = vcmask 130048
        %v418 = vsel %vm416, %v400, 0
        %420 = vmatpush.msra.mxu0 0.0
        %421 = vmatpush.msra.mxu0 0.0
        %422 = vmatpush.msra.mxu0 0.0
        %423 = vmatpush.msra.mxu0 0.0
        %424 = vmatpush.msra.mxu0 0.0
        %425 = vmatpush.msra.mxu0 0.0
        %426 = vmatpush.msra.mxu0 0.0
        %427 = vmatpush.msra.mxu0 0.0
        %428 = vmatpush.msra.mxu0 0.0
        %429 = vmatpush.msra.mxu0 0.0
        %430 = vmatpush.msra.mxu0 0.0
        %431 = vmatpush.msra.mxu0 0.0
        %432 = vmatpush.msra.mxu0 0.0
        %433 = vmatpush.msra.mxu0 0.0
        %434 = vmatpush.msra.mxu0 %v382
        %435 = vmatpush.msra.mxu0 %v381
        %436 = vmatmul.f32.gmra.mxu0 %v418
        %v437 = vpop.f32.mrf.mxu0
        %v438 = vadd.f32 %v383, %v437
        %439 = vdwg.mxu0
        %v440 = vmax.f32 %v438, 0.0
        %v441 = vld [vmem:[#allocation9] sm:$0xff]
        %v442 = vld [vmem:[#allocation9 + $0x8] sm:$0xff]
        %v443 = vld [vmem:[#allocation9 + $0x10] sm:$0xff]
        %v444 = vld [vmem:[#allocation9 + $0x18] sm:$0xff]
        %v445 = vld [vmem:[#allocation9 + $0x20] sm:$0xff]
        %v446 = vld [vmem:[#allocation9 + $0x28] sm:$0xff]
        %v447 = vld [vmem:[#allocation9 + $0x30] sm:$0xff]
        %v448 = vld [vmem:[#allocation9 + $0x38] sm:$0xff]
        %v449 = vld [vmem:[#allocation9 + $0x40] sm:$0xff]
        %v450 = vld [vmem:[#allocation9 + $0x48] sm:$0xff]
        %v451 = vld [vmem:[#allocation9 + $0x50] sm:$0xff]
        %v452 = vld [vmem:[#allocation9 + $0x58] sm:$0xff]
        %v453 = vld [vmem:[#allocation9 + $0x60] sm:$0xff]
        %v454 = vld [vmem:[#allocation9 + $0x68] sm:$0xff]
        %v455 = vld [vmem:[#allocation9 + $0x70] sm:$0xff]
        %v456 = vld [vmem:[#allocation9 + $0x78] sm:$0xff]
        %v457 = vld [vmem:[%s284] sm:$0xf]
        %458 = vmatpush.msra.mxu0 %v456
        %459 = vmatpush.msra.mxu0 %v455
        %460 = vmatpush.msra.mxu0 %v454
        %461 = vmatpush.msra.mxu0 %v453
        %462 = vmatpush.msra.mxu0 %v452
        %463 = vmatpush.msra.mxu0 %v451
        %464 = vmatpush.msra.mxu0 %v450
        %465 = vmatpush.msra.mxu0 %v449
        %466 = vmatpush.msra.mxu0 %v448
        %467 = vmatpush.msra.mxu0 %v447
        %468 = vmatpush.msra.mxu0 %v446
        %469 = vmatpush.msra.mxu0 %v445
        %470 = vmatpush.msra.mxu0 %v444
        %471 = vmatpush.msra.mxu0 %v443
        %472 = vmatpush.msra.mxu0 %v442
        %473 = vmatpush.msra.mxu0 %v441
        %474 = vmatmul.f32.gmra.mxu0 %v440
        %v475 = vpop.f32.mrf.mxu0
        %v476 = vadd.f32 %v457, %v475
        %477 = vdwg.mxu0
        %478 = vxpose.xlu0.b32.start [1/16] %v334, 128
        %479 = vxpose.xlu0.b32.cont [2/16] %v335, 128
        %480 = vxpose.xlu0.b32.cont [3/16] 0.0, 128
        %481 = vxpose.xlu0.b32.cont [4/16] 0.0, 128
        %482 = vxpose.xlu0.b32.cont [5/16] 0.0, 128
        %483 = vxpose.xlu0.b32.cont [6/16] 0.0, 128
        %484 = vxpose.xlu0.b32.cont [7/16] 0.0, 128
        %485 = vxpose.xlu0.b32.cont [8/16] 0.0, 128
        %486 = vxpose.xlu0.b32.cont [9/16] 0.0, 128
        %487 = vxpose.xlu0.b32.cont [10/16] 0.0, 128
        %488 = vxpose.xlu0.b32.cont [11/16] 0.0, 128
        %489 = vxpose.xlu0.b32.cont [12/16] 0.0, 128
        %490 = vxpose.xlu0.b32.cont [13/16] 0.0, 128
        %491 = vxpose.xlu0.b32.cont [14/16] 0.0, 128
        %492 = vxpose.xlu0.b32.cont [15/16] 0.0, 128
        %493 = vxpose.xlu0.b32.end [16/16] 0.0, 128
        %v494 = vpop.trf.xlu0
        %v495 = vpop.trf.xlu0
        %v496 = vpop.trf.xlu0
        %v497 = vpop.trf.xlu0
        %v498 = vpop.trf.xlu0
        %v499 = vpop.trf.xlu0
        %v500 = vpop.trf.xlu0
        %v501 = vpop.trf.xlu0
        %v502 = vpop.trf.xlu0
        %v503 = vpop.trf.xlu0
        %v504 = vpop.trf.xlu0
        %v505 = vpop.trf.xlu0
        %v506 = vpop.trf.xlu0
        %v507 = vpop.trf.xlu0
        %v508 = vpop.trf.xlu0
        %v509 = vpop.trf.xlu0
        %v511 = vsel %vm416, %v494, 0
        %513 = vmatpush.msra.mxu0 0.0
        %514 = vmatpush.msra.mxu0 0.0
        %515 = vmatpush.msra.mxu0 0.0
        %516 = vmatpush.msra.mxu0 0.0
        %517 = vmatpush.msra.mxu0 0.0
        %518 = vmatpush.msra.mxu0 0.0
        %519 = vmatpush.msra.mxu0 0.0
        %520 = vmatpush.msra.mxu0 0.0
        %521 = vmatpush.msra.mxu0 0.0
        %522 = vmatpush.msra.mxu0 0.0
        %523 = vmatpush.msra.mxu0 0.0
        %524 = vmatpush.msra.mxu0 0.0
        %525 = vmatpush.msra.mxu0 0.0
        %526 = vmatpush.msra.mxu0 0.0
        %527 = vmatpush.msra.mxu0 1.0
        %528 = vmatpush.msra.mxu0 1.0
        %529 = vmatmul.f32.gmra.mxu0 %v511
        %v530 = vpop.f32.mrf.mxu0
        %v531 = vadd.f32 0.0, %v530
        %532 = vdwg.mxu0
        %v533 = vmul.f32 %v531, 0.0625
        %534 = vxpose.xlu0.b32.start [1/16] %v356, 128
        %535 = vxpose.xlu0.b32.cont [2/16] %v357, 128
        %536 = vxpose.xlu0.b32.cont [3/16] 0.0, 128
        %537 = vxpose.xlu0.b32.cont [4/16] 0.0, 128
        %538 = vxpose.xlu0.b32.cont [5/16] 0.0, 128
        %539 = vxpose.xlu0.b32.cont [6/16] 0.0, 128
        %540 = vxpose.xlu0.b32.cont [7/16] 0.0, 128
        %541 = vxpose.xlu0.b32.cont [8/16] 0.0, 128
        %542 = vxpose.xlu0.b32.cont [9/16] 0.0, 128
        %543 = vxpose.xlu0.b32.cont [10/16] 0.0, 128
        %544 = vxpose.xlu0.b32.cont [11/16] 0.0, 128
        %545 = vxpose.xlu0.b32.cont [12/16] 0.0, 128
        %546 = vxpose.xlu0.b32.cont [13/16] 0.0, 128
        %547 = vxpose.xlu0.b32.cont [14/16] 0.0, 128
        %548 = vxpose.xlu0.b32.cont [15/16] 0.0, 128
        %549 = vxpose.xlu0.b32.end [16/16] 0.0, 128
        %v550 = vpop.trf.xlu0
        %v551 = vpop.trf.xlu0
        %v552 = vpop.trf.xlu0
        %v553 = vpop.trf.xlu0
        %v554 = vpop.trf.xlu0
        %v555 = vpop.trf.xlu0
        %v556 = vpop.trf.xlu0
        %v557 = vpop.trf.xlu0
        %v558 = vpop.trf.xlu0
        %v559 = vpop.trf.xlu0
        %v560 = vpop.trf.xlu0
        %v561 = vpop.trf.xlu0
        %v562 = vpop.trf.xlu0
        %v563 = vpop.trf.xlu0
        %v564 = vpop.trf.xlu0
        %v565 = vpop.trf.xlu0
        %v567 = vsel %vm416, %v550, 0
        %569 = vmatpush.msra.mxu0 0.0
        %570 = vmatpush.msra.mxu0 0.0
        %571 = vmatpush.msra.mxu0 0.0
        %572 = vmatpush.msra.mxu0 0.0
        %573 = vmatpush.msra.mxu0 0.0
        %574 = vmatpush.msra.mxu0 0.0
        %575 = vmatpush.msra.mxu0 0.0
        %576 = vmatpush.msra.mxu0 0.0
        %577 = vmatpush.msra.mxu0 0.0
        %578 = vmatpush.msra.mxu0 0.0
        %579 = vmatpush.msra.mxu0 0.0
        %580 = vmatpush.msra.mxu0 0.0
        %581 = vmatpush.msra.mxu0 0.0
        %582 = vmatpush.msra.mxu0 0.0
        %583 = vmatpush.msra.mxu0 1.0
        %584 = vmatpush.msra.mxu0 1.0
        %585 = vmatmul.f32.gmra.mxu0 %v567
        %v586 = vpop.f32.mrf.mxu0
        %v587 = vadd.f32 0.0, %v586
        %588 = vdwg.mxu0
        %v589 = vmul.f32 %v587, 0.06666667
        %v590 = vadd.f32 %v589, 1e-05
        %v591 = vrsqrt.pop %v590
        %v592 = vmul.f32 %v591, %v590
        %v593 = vmul.f32 %v592, %v591
        %v594 = vmul.f32 0.5, %v593
        %v595 = vsub.f32 1.5, %v594
        %v596 = vmul.f32 %v591, %v595
        %v597 = vmul.f32 %v590, %v596
        %vm598 = vcmp.eq.f32.partialorder %v590, inf
        %v599 = vsel %vm598, %v590, %v597
        %vm600 = vcmp.eq.f32.partialorder %v590, 0.0
        %v601 = vand.u32 %v590, 2147483648
        %v602 = vsel %vm600, %v601, %v599
        %604 = vset.pattern.permute.xlu0 0
        %605 = vperm.xlu0 %604, %v602
        %v606 = vpop.permute.xlu0 %605
        %v608 = vmul.f32 %v476, %v606
        %610 = vset.pattern.permute.xlu0 0
        %611 = vperm.xlu0 %610, %v533
        %v612 = vpop.permute.xlu0 %611
        %v614 = vadd.f32 %v608, %v612
        %615 = vst [vmem:[%s326] sm:$0xf] %v614
        %s616 = sand.u32 %s166, 1
        %s617 = scalar_lea.sflag [#allocation6], %s616
        %s618 = sand.u32 %s166, 1
        %s619 = smul.addr %s618, 4
        %s620 = scalar_lea.vmem [#allocation10], %s619
        // Predicated region
        $region53: #{tpu_custom_call.1} parent=39 // pred_check
          %p621 = pneg %p176
        $region54: #{tpu_custom_call.1} parent=39 // pred_check_branch
          %623 = sbr.rel (%p621) target = $region56
        $region55: #{tpu_custom_call.1} parent=39 // pred_region
          %625 = vsyncadd %s617, 0
          %s626 = smul.addr %s34, 4
          %s627 = scalar_lea.hbm %s6, %s626
          %s629 = sshll.u32 %s620, 4
          %s630 = int_to_ptr.vmem [resolvable:$true] %s629
          %s631 = sshll.u32 %s627, 4
          %s632 = int_to_ptr.hbm [resolvable:$true] %s631
          %634 = dma.vmem_to_hbm [thread:$0]  %s630, 64, %s632, %s617
        $region56: #{tpu_custom_call.1} parent=39 // pred_fallthru
          _
      $region40: #{tpu_custom_call.1} parent=5 // pred_fallthru
        _
      %p635 = scmp.le.s32.totalorder 2, %s29
      // Predicated region
      $region57: #{tpu_custom_call.1} parent=5 // pred_check
        %p636 = pneg %p635
      $region58: #{tpu_custom_call.1} parent=5 // pred_check_branch
        %638 = sbr.rel (%p636) target = $region60
      $region59: #{tpu_custom_call.1} parent=5 // pred_region
        %s639 = ssub.s32 %s29, 2
        // Predicated region
        $region61: #{tpu_custom_call.1} parent=59 // pred_check
          %p640 = pneg %p182
        $region62: #{tpu_custom_call.1} parent=59 // pred_check_branch
          %642 = sbr.rel (%p640) target = $region64
        $region63: #{tpu_custom_call.1} parent=59 // pred_region
          %s643 = sand.u32 %s167, 1
          %s644 = scalar_lea.sflag [#allocation6], %s643
          %s645 = sand.u32 %s167, 1
          %s646 = smul.addr %s645, 4
          %s647 = scalar_lea.vmem [#allocation10], %s646
          %649 = dma.done %s644, 64
        $region64: #{tpu_custom_call.1} parent=59 // pred_fallthru
          _
      $region60: #{tpu_custom_call.1} parent=5 // pred_fallthru
        _
    $region6: #{tpu_custom_call.1} parent=1 // loop_footer
      %s33 = sadd.s32 1, %s29
    $region7: #{tpu_custom_call.1} parent=1 // loop_footer_branch
      %28 = sbr.rel target = $region3
    $region8: #{tpu_custom_call.1} parent=1 // loop_exit
      _
    %650 = vsyncpa [#allocation5], 1
    %s651 = scalar_lea.sflag [#allocation5], 1
    %652 = vsyncpa %s651, 1
    %653 = vsyncpa [#allocation8], 1
    %s654 = scalar_lea.sflag [#allocation8], 1
    %655 = vsyncpa %s654, 1
    %656 = vsyncpa [#allocation6], 1
    %s657 = scalar_lea.sflag [#allocation6], 1
    %658 = vsyncpa %s657, 1

</llo_original>
